<compile_context>
chip_gen: v7x
topology: tpu7x:2x2x1
jax: 0.10.0
libtpu: 0.0.40
codegen_flags: <defaults>
</compile_context>

<pallas_src>
import functools

import jax
import jax.numpy as jnp
from jax.experimental import pallas as pl
from jax.experimental.pallas import tpu as pltpu

BN_EPS = 1e-3
_TARGET_TILE_BYTES = 512 * 1024      # per-step (single-buffer) tile target, ~1 MiB double-buffered


def _pick_tile_h(H, W, Cin, Cout, target_bytes=_TARGET_TILE_BYTES):
    """Largest TH that divides H, is a multiple of 8 and keeps one tile <= target."""
    if H < 8 or H % 8 != 0:
        return H
    cands = [th for th in range(8, H + 1, 8) if H % th == 0]
    fitting = [th for th in cands if th * W * (Cin + Cout) * 4 <= target_bytes]
    return max(fitting) if fitting else min(cands)


# ---------------------------------------------------------------------------
# Kernel 1: 1x1 conv (BN scale pre-folded into weights) + bias, one pyramid level.
# Spatially tiled over H; grid = (N, H // TH), both axes parallel.
# ---------------------------------------------------------------------------
def _conv_bias_kernel(TH, W, Cin, Cout, x_ref, w_ref, b_ref, o_ref):
    x = x_ref[0].reshape(TH * W, Cin)                                  # free re-tiling (W % 8 == 0)
    z = jnp.dot(x, w_ref[...], preferred_element_type=jnp.float32)     # MXU
    o_ref[0] = (z + b_ref[...]).reshape(TH, W, Cout)                   # lane-dense store (Cout = 128)


def conv1x1_bn(x, w, bias):
    N, H, W, Cin = x.shape
    Cout = w.shape[1]
    assert W % 8 == 0, "W must be a multiple of 8 for free (H,W,C)<->(H*W,C) reshapes"
    TH = _pick_tile_h(H, W, Cin, Cout)
    grid = (N, H // TH)

    tile_bytes = TH * W * (Cin + Cout) * 4
    wgt_bytes = (Cin * Cout + Cout) * 4
    est = 2 * (tile_bytes + wgt_bytes)                 # double-buffered blocks
    vmem_limit = int(min(100 * 2**20, max(16 * 2**20, 2 * est)))

    kernel = functools.partial(_conv_bias_kernel, TH, W, Cin, Cout)
    cost = pl.CostEstimate(
        flops=2 * N * H * W * Cin * Cout,
        transcendentals=0,
        bytes_accessed=N * H * W * (Cin + Cout) * 4 + wgt_bytes,
    )
    return pl.pallas_call(
        kernel,
        out_shape=jax.ShapeDtypeStruct((N, H, W, Cout), jnp.float32),
        grid=grid,
        in_specs=[
            pl.BlockSpec((1, TH, W, Cin), lambda n, h: (n, h, 0, 0)),
            pl.BlockSpec((Cin, Cout), lambda n, h: (0, 0)),
            pl.BlockSpec((1, Cout), lambda n, h: (0, 0)),
        ],
        out_specs=pl.BlockSpec((1, TH, W, Cout), lambda n, h: (n, h, 0, 0)),
        compiler_params=pltpu.CompilerParams(
            dimension_semantics=("parallel", "parallel"),
            vmem_limit_bytes=vmem_limit,
        ),
        cost_estimate=cost,
    )(x, w, bias)


# ---------------------------------------------------------------------------
# Kernel 2: last level's conv + down_channel conv (one fused 256-wide matmul)
# and the full chain of SamePaddingMaxPool2d(3, 2) downsamples, in one pallas_call.
# ---------------------------------------------------------------------------
def _pool_3x3_s2_same(buf_ref, row_ref, cur, hin, win):
    """3x3 / stride-2 max-pool, TF-"SAME" zero padding (pad bottom/right by 1).

    Only the padding row (index hin) and column (index win) are zeroed; stale data
    beyond the live (hin+1, win+1) window is never read by the strided accesses.
    Stride-2 over H is addressing on the leading axis; stride-2 over W is a strided
    sublane read of row_ref.
    """
    hout, wout = hin // 2, win // 2
    C = cur.shape[-1]
    # SAME padding: zero the pad row/col of the *current* level (also clears stale
    # data left there by a previous, larger pooling step).
    buf_ref[pl.ds(hin, 1), pl.ds(0, win + 1), :] = jnp.zeros((1, win + 1, C), jnp.float32)
    buf_ref[pl.ds(0, hin), pl.ds(win, 1), :] = jnp.zeros((hin, 1, C), jnp.float32)
    buf_ref[pl.ds(0, hin), pl.ds(0, win), :] = cur
    # vertical 3-max at even rows, limited to the live win+1 columns:
    #   v[h] = max(buf[2h], buf[2h+1], buf[2h+2])
    v = jnp.maximum(
        jnp.maximum(buf_ref[pl.ds(0, hout, stride=2), pl.ds(0, win + 1), :],
                    buf_ref[pl.ds(1, hout, stride=2), pl.ds(0, win + 1), :]),
        buf_ref[pl.ds(2, hout, stride=2), pl.ds(0, win + 1), :])
    # TODO(synk): replace this round trip with pltpu.roll-based horizontal maxima.
    row_ref[pl.ds(0, hout), pl.ds(0, win + 1), :] = v
    # horizontal 3-max at even cols: p[h,w] = max(v[h,2w], v[h,2w+1], v[h,2w+2])
    return jnp.maximum(
        jnp.maximum(row_ref[pl.ds(0, hout), pl.ds(0, wout, stride=2), :],
                    row_ref[pl.ds(0, hout), pl.ds(1, wout, stride=2), :]),
        row_ref[pl.ds(0, hout), pl.ds(2, wout, stride=2), :])


def _tail_kernel(H, W, Cin, Cout, down_times,
                 x_ref, w_ref, b_ref, o_ref, *rest):
    pool_refs = rest[:down_times]
    buf_ref, row_ref = rest[down_times:]

    x = x_ref[0].reshape(H * W, Cin)
    # One fused matmul feeding the 256-wide MXU: columns [:Cout] are the last
    # level's p_down_channel conv, columns [Cout:] are the down_channel conv.
    z = jnp.dot(x, w_ref[...], preferred_element_type=jnp.float32) + b_ref[...]
    o_ref[0] = z[:, :Cout].reshape(H, W, Cout)
    cur = z[:, Cout:].reshape(H, W, Cout)

    hin, win = H, W
    for t in range(down_times):                 # static: shapes known at trace time
        cur = _pool_3x3_s2_same(buf_ref, row_ref, cur, hin, win)
        pool_refs[t][0] = cur                   # lane-dense (C = 128) store
        hin, win = hin // 2, win // 2


def conv_bn_pool_chain(x, w_cat, b_cat, down_times):
    N, H, W, Cin = x.shape
    two_cout = w_cat.shape[1]
    Cout = two_cout // 2
    assert W % 8 == 0 and H % 8 == 0

    sizes, h, w = [], H, W
    for _ in range(down_times):
        assert h % 2 == 0 and w % 2 == 0, "pooling chain assumes even spatial sizes"
        h, w = h // 2, w // 2
        sizes.append((h, w))

    # Explicit VMEM budget (f32): double-buffered blocks + pool scratch.
    blk_bytes = H * W * (Cin + Cout) * 4 + sum(hh * ww for hh, ww in sizes) * Cout * 4
    wgt_bytes = (Cin * two_cout + two_cout) * 4
    scratch_bytes = ((H + 1) * (W + 1) + (H // 2) * (W + 1)) * Cout * 4
    est = 2 * (blk_bytes + wgt_bytes) + scratch_bytes
    if est > 56 * 2**20:
        # TODO(synk): spatially tile the tail's conv and run the pool chain per
        # H-strip if production resolutions ever exceed the v7x (64 MiB) budget.
        raise ValueError(f"tail kernel VMEM estimate {est / 2**20:.1f} MiB exceeds v7x budget")
    vmem_limit = int(min(100 * 2**20, max(16 * 2**20, 2 * est)))

    kernel = functools.partial(_tail_kernel, H, W, Cin, Cout, down_times)

    out_shapes = [jax.ShapeDtypeStruct((N, H, W, Cout), jnp.float32)]
    out_specs = [pl.BlockSpec((1, H, W, Cout), lambda n: (n, 0, 0, 0))]
    for (hh, ww) in sizes:
        out_shapes.append(jax.ShapeDtypeStruct((N, hh, ww, Cout), jnp.float32))
        out_specs.append(pl.BlockSpec((1, hh, ww, Cout), lambda n: (n, 0, 0, 0)))

    cost = pl.CostEstimate(
        flops=2 * N * H * W * Cin * two_cout,
        transcendentals=0,
        bytes_accessed=N * (H * W * (Cin + Cout) + sum(hh * ww for hh, ww in sizes) * Cout) * 4
                       + wgt_bytes,
    )

    outs = pl.pallas_call(
        kernel,
        out_shape=tuple(out_shapes),
        grid=(N,),
        in_specs=[
            pl.BlockSpec((1, H, W, Cin), lambda n: (n, 0, 0, 0)),
            pl.BlockSpec((Cin, two_cout), lambda n: (0, 0)),
            pl.BlockSpec((1, two_cout), lambda n: (0, 0)),
        ],
        out_specs=tuple(out_specs),
        scratch_shapes=[
            pltpu.VMEM((H + 1, W + 1, Cout), jnp.float32),   # zero-padded pool input
            pltpu.VMEM((H // 2, W + 1, Cout), jnp.float32),  # vertical-max rows
        ],
        compiler_params=pltpu.CompilerParams(
            dimension_semantics=("parallel",),
            vmem_limit_bytes=vmem_limit,
        ),
        cost_estimate=cost,
    )(x, w_cat, b_cat)
    return list(outs)


# ---------------------------------------------------------------------------
# FPNStem forward (mirrors the PyTorch module control flow).
# Parameters arrive pre-folded: (w_folded, bias) per conv, w_folded = w * bn_scale.
# ---------------------------------------------------------------------------
def fpn_stem_forward(xs, p_down_folded, down_folded, down_times):
    outs = []
    n_head = len(xs) - 1 if down_times > 0 else len(xs)
    for x, (wf, b) in zip(xs[:n_head], p_down_folded[:n_head]):
        outs.append(conv1x1_bn(x, wf, b))
    if down_times > 0:
        wa, ba = p_down_folded[-1]
        wb, bb = down_folded
        w_cat = jnp.concatenate([wa, wb], axis=1)           # (Cin, 2*Cout)
        b_cat = jnp.concatenate([ba, bb], axis=1)           # (1, 2*Cout)
        outs.extend(conv_bn_pool_chain(xs[-1], w_cat, b_cat, down_times))
    return outs


# ---------------------------------------------------------------------------
# Parameter prep + pure-JAX reference for validation.
# ---------------------------------------------------------------------------
def init_conv_bn(key, cin, cout):
    # TODO(synk): real checkpoints store the 1x1 conv weight as (Cout, Cin, 1, 1);
    # it must be transposed to (Cin, Cout) when loading.
    k1, k2, k3, k4, k5 = jax.random.split(key, 5)
    w = jax.random.normal(k1, (cin, cout), jnp.float32) / jnp.sqrt(cin)
    gamma = 1.0 + 0.1 * jax.random.normal(k2, (cout,), jnp.float32)
    beta = 0.1 * jax.random.normal(k3, (cout,), jnp.float32)
    mean = 0.1 * jax.random.normal(k4, (cout,), jnp.float32)
    var = jax.random.uniform(k5, (cout,), jnp.float32, 0.5, 1.5)
    scale = gamma * jax.lax.rsqrt(var + BN_EPS)
    bias = beta - mean * scale
    return w, scale.reshape(1, cout), bias.reshape(1, cout)


def fold_bn(params):
    """Fold BN scale into the conv weight (host-side, done once)."""
    w, scale, bias = params
    return w * scale, bias


def _ref_same_maxpool_3x3_s2(x):
    # TODO(synk): assumes SamePaddingMaxPool2d zero-pads (F.pad) bottom/right
    # before a padding-free MaxPool2d(3, 2), as in the reference EfficientDet code.
    xp = jnp.pad(x, ((0, 0), (0, 1), (0, 1), (0, 0)))
    return jax.lax.reduce_window(xp, -jnp.inf, jax.lax.max,
                                 (1, 3, 3, 1), (1, 2, 2, 1), "VALID")


def ref_forward(xs, p_down_params, down_params, down_times):
    outs = []
    for x, (w, s, b) in zip(xs, p_down_params):
        outs.append(jnp.einsum("nhwc,co->nhwo", x, w,
                               precision=jax.lax.Precision.HIGHEST) * s + b)
    if down_times > 0:
        w, s, b = down_params
        f = jnp.einsum("nhwc,co->nhwo", xs[-1], w,
                       precision=jax.lax.Precision.HIGHEST) * s + b
        for _ in range(down_times):
            f = _ref_same_maxpool_3x3_s2(f)
            outs.append(f)
    return outs


if __name__ == "__main__":
    key = jax.random.PRNGKey(0)
    N = 2
    p_i_c = (32, 64, 128)            # per-level input channels (backbone widths)
    o_c = 128                        # FPN width: exactly one 128-lane vreg row
    pyramid_levels = 5               # -> down_times = 2
    spatials = (32, 16, 8)           # H = W per input level
    down_times = pyramid_levels - len(p_i_c)

    kx, kp = jax.random.split(key)
    xs = []
    for cin, s in zip(p_i_c, spatials):
        kx, kk = jax.random.split(kx)
        xs.append(jax.random.normal(kk, (N, s, s, cin), jnp.float32))

    keys = jax.random.split(kp, len(p_i_c) + 1)
    p_down_params = [init_conv_bn(keys[i], cin, o_c) for i, cin in enumerate(p_i_c)]
    down_params = init_conv_bn(keys[-1], p_i_c[-1], o_c)

    p_down_folded = [fold_bn(p) for p in p_down_params]
    down_folded = fold_bn(down_params)

    outs = fpn_stem_forward(xs, p_down_folded, down_folded, down_times)
    outs = jax.block_until_ready(outs)

    # shape checks
    exp_spatials = list(spatials) + [spatials[-1] >> (t + 1) for t in range(down_times)]
    assert len(outs) == pyramid_levels
    for o, s in zip(outs, exp_spatials):
        assert o.shape == (N, s, s, o_c), o.shape
        assert o.dtype == jnp.float32

    # numerical check against a pure-JAX reference (unfolded BN math)
    refs = ref_forward(xs, p_down_params, down_params, down_times)
    for o, r in zip(outs, refs):
        err = float(jnp.max(jnp.abs(o - r)))
        assert err < 5e-2, f"max abs err {err}"

    print("KERNEL_OK")
</pallas_src>

<mosaic_0001>
module attributes {stable_mosaic.version = 11 : i64} {
  func.func @_conv_bias_kernel(%arg0: i32, %arg1: i32, %arg2: memref<1x16x32x32xf32, #tpu.memory_space<vmem>>, %arg3: memref<32x128xf32, #tpu.memory_space<vmem>>, %arg4: memref<1x128xf32, #tpu.memory_space<vmem>>, %arg5: memref<1x16x32x128xf32, #tpu.memory_space<vmem>>) attributes {dimension_semantics = [#tpu.dimension_semantics<parallel>, #tpu.dimension_semantics<parallel>], iteration_bounds = array<i64: 2, 2>, scalar_prefetch = 0 : i64, scratch_operands = 0 : i64, tpu.core_type = #tpu.core_type<tc>, window_params = [{transform_indices = @transform_0, window_bounds = array<i64: 1, 16, 32, 32>}, {pipeline_mode = #tpu.pipeline_mode<synchronous>, transform_indices = @transform_1, window_bounds = array<i64: 32, 128>}, {pipeline_mode = #tpu.pipeline_mode<synchronous>, transform_indices = @transform_2, window_bounds = array<i64: 1, 128>}, {transform_indices = @transform_3, window_bounds = array<i64: 1, 16, 32, 128>}]} {
    %c0 = arith.constant 0 : index
    %c0_0 = arith.constant 0 : index
    %c0_1 = arith.constant 0 : index
    %c0_2 = arith.constant 0 : index
    %0 = vector.load %arg2[%c0, %c0_0, %c0_1, %c0_2] : memref<1x16x32x32xf32, #tpu.memory_space<vmem>>, vector<1x16x32x32xf32>
    %1 = vector.shape_cast %0 : vector<1x16x32x32xf32> to vector<16x32x32xf32>
    %2 = vector.shape_cast %1 : vector<16x32x32xf32> to vector<512x32xf32>
    %c0_3 = arith.constant 0 : index
    %c0_4 = arith.constant 0 : index
    %3 = vector.load %arg3[%c0_3, %c0_4] : memref<32x128xf32, #tpu.memory_space<vmem>>, vector<32x128xf32>
    %cst = arith.constant dense<0.000000e+00> : vector<512x128xf32>
    %4 = tpu.matmul %2, %3, %cst {dimension_numbers = #tpu.dot_dimension_numbers<[1], [0], [0], [1], [0, 0, 1, 1], [], []>} : vector<512x32xf32>, vector<32x128xf32>, vector<512x128xf32> -> vector<512x128xf32>
    %c0_5 = arith.constant 0 : index
    %c0_6 = arith.constant 0 : index
    %5 = vector.load %arg4[%c0_5, %c0_6] : memref<1x128xf32, #tpu.memory_space<vmem>>, vector<1x128xf32>
    %6 = vector.broadcast %5 : vector<1x128xf32> to vector<512x128xf32>
    %7 = arith.addf %4, %6 : vector<512x128xf32>
    %8 = vector.shape_cast %7 : vector<512x128xf32> to vector<16x32x128xf32>
    %c0_7 = arith.constant 0 : index
    %c0_8 = arith.constant 0 : index
    %c0_9 = arith.constant 0 : index
    %c0_10 = arith.constant 0 : index
    %9 = vector.load %arg5[%c0_7, %c0_8, %c0_9, %c0_10] : memref<1x16x32x128xf32, #tpu.memory_space<vmem>>, vector<1x16x32x128xf32>
    %10 = vector.shape_cast %9 : vector<1x16x32x128xf32> to vector<16x32x128xf32>
    %11 = vector.shape_cast %8 : vector<16x32x128xf32> to vector<1x16x32x128xf32>
    tpu.vector_store %arg5[%c0_7, %c0_8, %c0_9, %c0_10], %11 {strides = array<i32>} : memref<1x16x32x128xf32, #tpu.memory_space<vmem>>, vector<1x16x32x128xf32>,
    return
  }
  func.func @transform_0(%arg0: i32, %arg1: i32) -> (i32, i32, i32, i32) {
    %c0_i32 = arith.constant 0 : i32
    %c0_i32_0 = arith.constant 0 : i32
    %c0_i32_1 = arith.constant 0 : i32
    return %arg0, %arg1, %c0_i32, %c0_i32_0 : i32, i32, i32, i32
  }
  func.func @transform_1(%arg0: i32, %arg1: i32) -> (i32, i32) {
    %c0_i32 = arith.constant 0 : i32
    %c0_i32_0 = arith.constant 0 : i32
    %c0_i32_1 = arith.constant 0 : i32
    return %c0_i32, %c0_i32_0 : i32, i32
  }
  func.func @transform_2(%arg0: i32, %arg1: i32) -> (i32, i32) {
    %c0_i32 = arith.constant 0 : i32
    %c0_i32_0 = arith.constant 0 : i32
    %c0_i32_1 = arith.constant 0 : i32
    return %c0_i32, %c0_i32_0 : i32, i32
  }
  func.func @transform_3(%arg0: i32, %arg1: i32) -> (i32, i32, i32, i32) {
    %c0_i32 = arith.constant 0 : i32
    %c0_i32_0 = arith.constant 0 : i32
    %c0_i32_1 = arith.constant 0 : i32
    return %arg0, %arg1, %c0_i32, %c0_i32_0 : i32, i32, i32, i32
  }
}

</mosaic_0001>

<llo_original>
// kernel: tpu_custom_call.1
$region0: #{tpu_custom_call.1}
  #allocation0 [shape = 'u32[]', space=smem, size = 0x4, offset = 0x4, fixed_abs, tag = 'smem constant byte address 0x4 - core index']
  #allocation1 [shape = 'u32[144,128]{1,0:T(1,128)}', space=vmem, size = 0x12000, scoped, tag = 'internal scratch']
  %s0 = inlined_call_operand.hbm [shape: f32[2,32,32,32], index: 0, kind: input, shape index: {}]
  %s1 = inlined_call_operand.hbm [shape: f32[32,128], index: 1, kind: input, shape index: {}]
  %s2 = inlined_call_operand.vmem [shape: f32[1,128], index: 2, kind: input, shape index: {}]
  %s3 = inlined_call_operand.hbm [shape: f32[2,32,32,128], index: 3, kind: output, shape index: {}]
  %s4 = sld [smem:[#allocation0]]
  $region53: #{tpu_custom_call.1} parent=0
    _
  %s6 = ssub.s32 1, %s4
  %s7 = scalar_select 0, %s6, %s4
  $region1: #{tpu_custom_call.1} parent=0
    #allocation2 [shape = 'u8[524288]{0}', space=vmem, size = 0x80000, scoped, tag = 'input window, operand 0']
    #allocation3 [shape = 's32[2]{0}', space=sflag, size = 0x8, scoped, tag = 'scoped memory for tpu_custom_call.1']
    #allocation4 [shape = 's32[2]{0}', space=sflag, size = 0x8, scoped, tag = 'scoped memory for tpu_custom_call.1']
    #allocation5 [shape = 'u8[16384]{0}', space=vmem, size = 0x4000, scoped, tag = 'input window, operand 1, single buffered']
    #allocation6 [shape = 's32[1]{0}', space=sflag, size = 0x4, scoped, tag = 'scoped memory for tpu_custom_call.1']
    #allocation7 [shape = 'u8[524288]{0}', space=vmem, size = 0x80000, scoped, tag = 'output window, operand 0']
    %8 = vsyncpa [#allocation3], 0
    %s9 = scalar_lea.sflag [#allocation3], 1
    %10 = vsyncpa %s9, 0
    %11 = vsyncpa [#allocation6], 0
    %12 = vsyncpa [#allocation4], 0
    %s13 = scalar_lea.sflag [#allocation4], 1
    %14 = vsyncpa %s13, 0
    loop: start=0, step=1, limit=6
    $region2: #{tpu_custom_call.1} parent=1 // loop_pre_header
      _
    $region3: #{tpu_custom_call.1} parent=1 // loop_header
      %s16 = sphi 0, %s20
      %p17 = scmp.ge.s32.totalorder %s16, 6
      %s23 = sphi 0, %s35
      %s24 = sphi 0, %s31
      %s25 = sphi 0, %s23
      %s26 = sphi 0, %s24
      %s27 = sphi 0, %s25
      %s28 = sphi 0, %s26
      %s40 = sphi 0, %s42
      %s43 = sphi 0, %s40
      %s44 = sphi 0, %s43
      %s60 = sphi 0, %s44
      %s64 = sphi 0, %s64
      %s66 = sphi 0, %s64
      %s67 = sphi 0, %s66
      %s81 = sphi 0, %s67
      %s85 = sphi 0, %s85
      %s87 = sphi 0, %s85
      %s88 = sphi 0, %s87
      %s102 = sphi 0, %s88
      %s110 = sphi 0, %s112
      %s113 = sphi 0, %s110
      %s114 = sphi 0, %s113
      %s130 = sphi 0, %s114
    $region4: #{tpu_custom_call.1} parent=1 // loop_header_branch
      %19 = sbr.rel (%p17) target = $region8
    $region5: #{tpu_custom_call.1} parent=1 // loop_body
      %s21 = ssub.s32 %s16, 1
      %s22 = ssub.s32 %s16, 2
      %s29 = sadd.s32 1, %s24
      %p30 = scmp.ge.s32.totalorder %s29, 2
      %s31 = scalar_select %p30, 0, %s29
      %s32 = sadd.s32 1, %s23
      %s33 = scalar_select %p30, %s32, %s23
      %p34 = scmp.ge.s32.totalorder %s33, 2
      %s35 = scalar_select %p34, 0, %s33
      %s36 = ssub.s32 %s23, %s35
      %s37 = ssub.s32 %s24, %s31
      %s38 = sor.u32 %s36, %s37
      %p39 = scmp.eq.s32.totalorder %s38, 0
      %s41 = sadd.s32 %s40, 1
      %s42 = scalar_select %p39, %s40, %s41
      %p45 = pneg %p39
      %p46 = scmp.eq.s32.totalorder %s16, 3
      %p47 = por %p45, %p46
      %p48 = scmp.ne.s32.totalorder %s40, %s43
      %p49 = scmp.eq.s32.totalorder %s16, 0
      %p50 = por %p48, %p49
      %p51 = scmp.ne.s32.totalorder %s40, %s43
      %p52 = scmp.eq.s32.totalorder %s21, 3
      %p53 = por %p51, %p52
      %p54 = scmp.ne.s32.totalorder %s43, %s44
      %p55 = scmp.eq.s32.totalorder %s21, 0
      %p56 = por %p54, %p55
      %p57 = scmp.ne.s32.totalorder %s43, %s44
      %p58 = scmp.eq.s32.totalorder %s22, 3
      %p59 = por %p57, %p58
      %p61 = scmp.ne.s32.totalorder %s44, %s60
      %p62 = scmp.eq.s32.totalorder %s22, 0
      %p63 = por %p61, %p62
      %s65 = sadd.s32 %s64, 1
      %p68 = scmp.eq.s32.totalorder %s16, 3
      %p69 = scmp.ne.s32.totalorder %s64, %s66
      %p70 = scmp.eq.s32.totalorder %s16, 0
      %p71 = por %p69, %p70
      %p72 = scmp.ne.s32.totalorder %s64, %s66
      %p73 = scmp.eq.s32.totalorder %s21, 3
      %p74 = por %p72, %p73
      %p75 = scmp.ne.s32.totalorder %s66, %s67
      %p76 = scmp.eq.s32.totalorder %s21, 0
      %p77 = por %p75, %p76
      %p78 = scmp.ne.s32.totalorder %s66, %s67
      %p79 = scmp.eq.s32.totalorder %s22, 3
      %p80 = por %p78, %p79
      %p82 = scmp.ne.s32.totalorder %s67, %s81
      %p83 = scmp.eq.s32.totalorder %s22, 0
      %p84 = por %p82, %p83
      %s86 = sadd.s32 %s85, 1
      %p89 = scmp.eq.s32.totalorder %s16, 3
      %p90 = scmp.ne.s32.totalorder %s85, %s87
      %p91 = scmp.eq.s32.totalorder %s16, 0
      %p92 = por %p90, %p91
      %p93 = scmp.ne.s32.totalorder %s85, %s87
      %p94 = scmp.eq.s32.totalorder %s21, 3
      %p95 = por %p93, %p94
      %p96 = scmp.ne.s32.totalorder %s87, %s88
      %p97 = scmp.eq.s32.totalorder %s21, 0
      %p98 = por %p96, %p97
      %p99 = scmp.ne.s32.totalorder %s87, %s88
      %p100 = scmp.eq.s32.totalorder %s22, 3
      %p101 = por %p99, %p100
      %p103 = scmp.ne.s32.totalorder %s88, %s102
      %p104 = scmp.eq.s32.totalorder %s22, 0
      %p105 = por %p103, %p104
      %s106 = ssub.s32 %s23, %s35
      %s107 = ssub.s32 %s24, %s31
      %s108 = sor.u32 %s106, %s107
      %p109 = scmp.eq.s32.totalorder %s108, 0
      %s111 = sadd.s32 %s110, 1
      %s112 = scalar_select %p109, %s110, %s111
      %p115 = pneg %p109
      %p116 = scmp.eq.s32.totalorder %s16, 3
      %p117 = por %p115, %p116
      %p118 = scmp.ne.s32.totalorder %s110, %s113
      %p119 = scmp.eq.s32.totalorder %s16, 0
      %p120 = por %p118, %p119
      %p121 = scmp.ne.s32.totalorder %s110, %s113
      %p122 = scmp.eq.s32.totalorder %s21, 3
      %p123 = por %p121, %p122
      %p124 = scmp.ne.s32.totalorder %s113, %s114
      %p125 = scmp.eq.s32.totalorder %s21, 0
      %p126 = por %p124, %p125
      %p127 = scmp.ne.s32.totalorder %s113, %s114
      %p128 = scmp.eq.s32.totalorder %s22, 3
      %p129 = por %p127, %p128
      %p131 = scmp.ne.s32.totalorder %s114, %s130
      %p132 = scmp.eq.s32.totalorder %s22, 0
      %p133 = por %p131, %p132
      %p134 = scmp.le.s32.totalorder 1, %s16
      %p135 = scmp.lt.s32.totalorder %s16, 5
      %p136 = pnand %p134, %p135
      %p137 = pneg %p136
      // Predicated region
      $region9: #{tpu_custom_call.1} parent=5 // pred_check
        _
      $region10: #{tpu_custom_call.1} parent=5 // pred_check_branch
        %139 = sbr.rel (%p136) target = $region12
      $region11: #{tpu_custom_call.1} parent=5 // pred_region
        %s140 = ssub.s32 %s16, 1
        // Predicated region
        $region13: #{tpu_custom_call.1} parent=11 // pred_check
          %p141 = pneg %p77
        $region14: #{tpu_custom_call.1} parent=11 // pred_check_branch
          %143 = sbr.rel (%p141) target = $region16
        $region15: #{tpu_custom_call.1} parent=11 // pred_region
          %s145 = ssub.s32 512, 512
          %146 = vsyncadd [#allocation6], %s145
          %s147 = sshll.u32 [#allocation5], 4
          %s148 = int_to_ptr.vmem [resolvable:$true] %s147
          %153 = dma.hbm_to_vmem [thread:$0]  %s1, 512, %s148, [#allocation6], 128, 128, 8
        $region16: #{tpu_custom_call.1} parent=11 // pred_fallthru
          _
        // Predicated region
        $region17: #{tpu_custom_call.1} parent=11 // pred_check
          %p154 = pneg %p98
        $region18: #{tpu_custom_call.1} parent=11 // pred_check_branch
          %156 = sbr.rel (%p154) target = $region20
        $region19: #{tpu_custom_call.1} parent=11 // pred_region
          _
        $region20: #{tpu_custom_call.1} parent=11 // pred_fallthru
          _
      $region12: #{tpu_custom_call.1} parent=5 // pred_fallthru
        _
      %p157 = scmp.lt.s32.totalorder %s16, 4
      // Predicated region
      $region21: #{tpu_custom_call.1} parent=5 // pred_check
        %p158 = pneg %p157
      $region22: #{tpu_custom_call.1} parent=5 // pred_check_branch
        %160 = sbr.rel (%p158) target = $region24
      $region23: #{tpu_custom_call.1} parent=5 // pred_region
        // Predicated region
        $region25: #{tpu_custom_call.1} parent=23 // pred_check
          %p161 = pneg %p50
        $region26: #{tpu_custom_call.1} parent=23 // pred_check_branch
          %163 = sbr.rel (%p161) target = $region28
        $region27: #{tpu_custom_call.1} parent=23 // pred_region
          %s164 = sand.u32 %s40, 1
          %s165 = scalar_lea.sflag [#allocation3], %s164
          %s166 = sand.u32 %s40, 1
          %s167 = smul.addr %s166, 512
          %s168 = scalar_lea.vmem [#allocation2], %s167
          %s169 = smul.u32 16, %s24
          %s171 = ssub.s32 8192, 8192
          %172 = vsyncadd %s165, %s171
          %s173 = smul.addr %s169, 4
          %s174 = smul.addr %s23, 128
          %s175 = sadd.s32 %s173, %s174
          %s176 = smul.addr %s175, 128
          %s177 = scalar_lea.hbm %s0, %s176
          %s178 = sshll.u32 %s168, 4
          %s179 = int_to_ptr.vmem [resolvable:$true] %s178
          %184 = dma.hbm_to_vmem [thread:$0]  %s177, 8192, %s179, %s165, 128, 128, 8
        $region28: #{tpu_custom_call.1} parent=23 // pred_fallthru
          _
      $region24: #{tpu_custom_call.1} parent=5 // pred_fallthru
        _
      %p185 = scmp.le.s32.totalorder 1, %s16
      %p186 = scmp.lt.s32.totalorder %s16, 5
      %p187 = pnand %p185, %p186
      %p188 = pneg %p187
      // Predicated region
      $region29: #{tpu_custom_call.1} parent=5 // pred_check
        _
      $region30: #{tpu_custom_call.1} parent=5 // pred_check_branch
        %190 = sbr.rel (%p187) target = $region32
      $region31: #{tpu_custom_call.1} parent=5 // pred_region
        %s191 = ssub.s32 %s16, 1
        %s192 = sand.u32 %s43, 1
        %s193 = scalar_lea.sflag [#allocation3], %s192
        %s194 = sand.u32 %s43, 1
        %s195 = smul.addr %s194, 512
        %s196 = scalar_lea.vmem [#allocation2], %s195
        // Predicated region
        $region33: #{tpu_custom_call.1} parent=31 // pred_check
          %p197 = pneg %p56
        $region34: #{tpu_custom_call.1} parent=31 // pred_check_branch
          %199 = sbr.rel (%p197) target = $region36
        $region35: #{tpu_custom_call.1} parent=31 // pred_region
          %200 = dma.done %s193, 8192
        $region36: #{tpu_custom_call.1} parent=31 // pred_fallthru
          _
        // Predicated region
        $region37: #{tpu_custom_call.1} parent=31 // pred_check
          %p201 = pneg %p77
        $region38: #{tpu_custom_call.1} parent=31 // pred_check_branch
          %203 = sbr.rel (%p201) target = $region40
        $region39: #{tpu_custom_call.1} parent=31 // pred_region
          %204 = dma.done [#allocation6], 512
        $region40: #{tpu_custom_call.1} parent=31 // pred_fallthru
          _
        %s205 = sand.u32 %s43, 1
        %s206 = scalar_lea.sflag [#allocation3], %s205
        %s207 = sand.u32 %s43, 1
        %s208 = smul.addr %s207, 512
        %s209 = scalar_lea.vmem [#allocation2], %s208
        %p210 = pneg %p56
        %p211 = pneg %p53
        %p212 = pneg %p77
        %p213 = pneg %p74
        %p214 = pneg %p98
        %p215 = pneg %p95
        %p216 = pneg %p126
        %p217 = pneg %p123
        %s218 = sand.u32 %s113, 1
        %s219 = scalar_lea.sflag [#allocation4], %s218
        %s220 = sand.u32 %s113, 1
        %s221 = smul.addr %s220, 512
        %s222 = scalar_lea.vmem [#allocation7], %s221
        %s223 = smul.u32 16, %s26
        %s224 = smul.u32 16, %s26
        %v225 = vld [vmem:[%s196] sm:$0xff]
        %v226 = vld [vmem:[%s196 + $0x8] sm:$0xff]
        %v227 = vld [vmem:[%s196 + $0x10] sm:$0xff]
        %v228 = vld [vmem:[%s196 + $0x18] sm:$0xff]
        %v229 = vld [vmem:[%s196 + $0x20] sm:$0xff]
        %v230 = vld [vmem:[%s196 + $0x28] sm:$0xff]
        %v231 = vld [vmem:[%s196 + $0x30] sm:$0xff]
        %v232 = vld [vmem:[%s196 + $0x38] sm:$0xff]
        %v233 = vld [vmem:[%s196 + $0x40] sm:$0xff]
        %v234 = vld [vmem:[%s196 + $0x48] sm:$0xff]
        %v235 = vld [vmem:[%s196 + $0x50] sm:$0xff]
        %v236 = vld [vmem:[%s196 + $0x58] sm:$0xff]
        %v237 = vld [vmem:[%s196 + $0x60] sm:$0xff]
        %v238 = vld [vmem:[%s196 + $0x68] sm:$0xff]
        %v239 = vld [vmem:[%s196 + $0x70] sm:$0xff]
        %v240 = vld [vmem:[%s196 + $0x78] sm:$0xff]
        %v241 = vld [vmem:[%s196 + $0x80] sm:$0xff]
        %v242 = vld [vmem:[%s196 + $0x88] sm:$0xff]
        %v243 = vld [vmem:[%s196 + $0x90] sm:$0xff]
        %v244 = vld [vmem:[%s196 + $0x98] sm:$0xff]
        %v245 = vld [vmem:[%s196 + $0xa0] sm:$0xff]
        %v246 = vld [vmem:[%s196 + $0xa8] sm:$0xff]
        %v247 = vld [vmem:[%s196 + $0xb0] sm:$0xff]
        %v248 = vld [vmem:[%s196 + $0xb8] sm:$0xff]
        %v249 = vld [vmem:[%s196 + $0xc0] sm:$0xff]
        %v250 = vld [vmem:[%s196 + $0xc8] sm:$0xff]
        %v251 = vld [vmem:[%s196 + $0xd0] sm:$0xff]
        %v252 = vld [vmem:[%s196 + $0xd8] sm:$0xff]
        %v253 = vld [vmem:[%s196 + $0xe0] sm:$0xff]
        %v254 = vld [vmem:[%s196 + $0xe8] sm:$0xff]
        %v255 = vld [vmem:[%s196 + $0xf0] sm:$0xff]
        %v256 = vld [vmem:[%s196 + $0xf8] sm:$0xff]
        %v257 = vld [vmem:[%s196 + $0x100] sm:$0xff]
        %v258 = vld [vmem:[%s196 + $0x108] sm:$0xff]
        %v259 = vld [vmem:[%s196 + $0x110] sm:$0xff]
        %v260 = vld [vmem:[%s196 + $0x118] sm:$0xff]
        %v261 = vld [vmem:[%s196 + $0x120] sm:$0xff]
        %v262 = vld [vmem:[%s196 + $0x128] sm:$0xff]
        %v263 = vld [vmem:[%s196 + $0x130] sm:$0xff]
        %v264 = vld [vmem:[%s196 + $0x138] sm:$0xff]
        %v265 = vld [vmem:[%s196 + $0x140] sm:$0xff]
        %v266 = vld [vmem:[%s196 + $0x148] sm:$0xff]
        %v267 = vld [vmem:[%s196 + $0x150] sm:$0xff]
        %v268 = vld [vmem:[%s196 + $0x158] sm:$0xff]
        %v269 = vld [vmem:[%s196 + $0x160] sm:$0xff]
        %v270 = vld [vmem:[%s196 + $0x168] sm:$0xff]
        %v271 = vld [vmem:[%s196 + $0x170] sm:$0xff]
        %v272 = vld [vmem:[%s196 + $0x178] sm:$0xff]
        %v273 = vld [vmem:[%s196 + $0x180] sm:$0xff]
        %v274 = vld [vmem:[%s196 + $0x188] sm:$0xff]
        %v275 = vld [vmem:[%s196 + $0x190] sm:$0xff]
        %v276 = vld [vmem:[%s196 + $0x198] sm:$0xff]
        %v277 = vld [vmem:[%s196 + $0x1a0] sm:$0xff]
        %v278 = vld [vmem:[%s196 + $0x1a8] sm:$0xff]
        %v279 = vld [vmem:[%s196 + $0x1b0] sm:$0xff]
        %v280 = vld [vmem:[%s196 + $0x1b8] sm:$0xff]
        %v281 = vld [vmem:[%s196 + $0x1c0] sm:$0xff]
        %v282 = vld [vmem:[%s196 + $0x1c8] sm:$0xff]
        %v283 = vld [vmem:[%s196 + $0x1d0] sm:$0xff]
        %v284 = vld [vmem:[%s196 + $0x1d8] sm:$0xff]
        %v285 = vld [vmem:[%s196 + $0x1e0] sm:$0xff]
        %v286 = vld [vmem:[%s196 + $0x1e8] sm:$0xff]
        %v287 = vld [vmem:[%s196 + $0x1f0] sm:$0xff]
        %v288 = vld [vmem:[%s196 + $0x1f8] sm:$0xff]
        %v289 = vld [vmem:[#allocation5] sm:$0xff]
        %v290 = vld [vmem:[#allocation5 + $0x8] sm:$0xff]
        %v291 = vld [vmem:[#allocation5 + $0x10] sm:$0xff]
        %v292 = vld [vmem:[#allocation5 + $0x18] sm:$0xff]
        %v293 = vld [vmem:[%s2] sm:$0x1]
        %v295 = vlaneseq
        %v296 = vshrl.u32 %v295, 7
        %v297 = vsub.s32 0, %v296
        %v298 = vrot.slane %v293, %v297
        %vm300 = vcmask 261120
        %v302 = vsel %vm300, %v225, 0
        %v305 = vsel %vm300, %v226, 0
        %v308 = vsel %vm300, %v227, 0
        %v311 = vsel %vm300, %v228, 0
        %v314 = vsel %vm300, %v229, 0
        %v317 = vsel %vm300, %v230, 0
        %v320 = vsel %vm300, %v231, 0
        %v323 = vsel %vm300, %v232, 0
        %v326 = vsel %vm300, %v233, 0
        %v329 = vsel %vm300, %v234, 0
        %v332 = vsel %vm300, %v235, 0
        %v335 = vsel %vm300, %v236, 0
        %v338 = vsel %vm300, %v237, 0
        %v341 = vsel %vm300, %v238, 0
        %v344 = vsel %vm300, %v239, 0
        %v347 = vsel %vm300, %v240, 0
        %v350 = vsel %vm300, %v241, 0
        %v353 = vsel %vm300, %v242, 0
        %v356 = vsel %vm300, %v243, 0
        %v359 = vsel %vm300, %v244, 0
        %v362 = vsel %vm300, %v245, 0
        %v365 = vsel %vm300, %v246, 0
        %v368 = vsel %vm300, %v247, 0
        %v371 = vsel %vm300, %v248, 0
        %v374 = vsel %vm300, %v249, 0
        %v377 = vsel %vm300, %v250, 0
        %v380 = vsel %vm300, %v251, 0
        %v383 = vsel %vm300, %v252, 0
        %v386 = vsel %vm300, %v253, 0
        %v389 = vsel %vm300, %v254, 0
        %v392 = vsel %vm300, %v255, 0
        %v395 = vsel %vm300, %v256, 0
        %v398 = vsel %vm300, %v257, 0
        %v401 = vsel %vm300, %v258, 0
        %v404 = vsel %vm300, %v259, 0
        %v407 = vsel %vm300, %v260, 0
        %v410 = vsel %vm300, %v261, 0
        %v413 = vsel %vm300, %v262, 0
        %v416 = vsel %vm300, %v263, 0
        %v419 = vsel %vm300, %v264, 0
        %v422 = vsel %vm300, %v265, 0
        %v425 = vsel %vm300, %v266, 0
        %v428 = vsel %vm300, %v267, 0
        %v431 = vsel %vm300, %v268, 0
        %v434 = vsel %vm300, %v269, 0
        %v437 = vsel %vm300, %v270, 0
        %v440 = vsel %vm300, %v271, 0
        %v443 = vsel %vm300, %v272, 0
        %v446 = vsel %vm300, %v273, 0
        %v449 = vsel %vm300, %v274, 0
        %v452 = vsel %vm300, %v275, 0
        %v455 = vsel %vm300, %v276, 0
        %v458 = vsel %vm300, %v277, 0
        %v461 = vsel %vm300, %v278, 0
        %v464 = vsel %vm300, %v279, 0
        %v467 = vsel %vm300, %v280, 0
        %v470 = vsel %vm300, %v281, 0
        %v473 = vsel %vm300, %v282, 0
        %v476 = vsel %vm300, %v283, 0
        %v479 = vsel %vm300, %v284, 0
        %v482 = vsel %vm300, %v285, 0
        %v485 = vsel %vm300, %v286, 0
        %v488 = vsel %vm300, %v287, 0
        %v491 = vsel %vm300, %v288, 0
        %493 = vmatprep.subr.mxu0 0.0
        %494 = vmatpush1.msra.mxu0 %v289
        %495 = vmatprep.subr.mxu0 0.0
        %496 = vmatpush1.msra.mxu0 %v290
        %497 = vmatprep.subr.mxu0 0.0
        %498 = vmatpush1.msra.mxu0 %v291
        %499 = vmatprep.subr.mxu0 0.0
        %500 = vmatpush1.msra.mxu0 %v292
        %501 = vmatprep.subr.mxu0 0.0
        %502 = vmatpush1.msra.mxu0 0.0
        %503 = vmatprep.subr.mxu0 0.0
        %504 = vmatpush1.msra.mxu0 0.0
        %505 = vmatprep.subr.mxu0 0.0
        %506 = vmatpush1.msra.mxu0 0.0
        %507 = vmatprep.subr.mxu0 0.0
        %508 = vmatpush1.msra.mxu0 0.0
        %509 = vmatprep.subr.mxu0 0.0
        %510 = vmatpush1.msra.mxu0 0.0
        %511 = vmatprep.subr.mxu0 0.0
        %512 = vmatpush1.msra.mxu0 0.0
        %513 = vmatprep.subr.mxu0 0.0
        %514 = vmatpush1.msra.mxu0 0.0
        %515 = vmatprep.subr.mxu0 0.0
        %516 = vmatpush1.msra.mxu0 0.0
        %517 = vmatprep.subr.mxu0 0.0
        %518 = vmatpush1.msra.mxu0 0.0
        %519 = vmatprep.subr.mxu0 0.0
        %520 = vmatpush1.msra.mxu0 0.0
        %521 = vmatprep.subr.mxu0 0.0
        %522 = vmatpush1.msra.mxu0 0.0
        %523 = vmatprep.subr.mxu0 0.0
        %524 = vmatpush1.msra.mxu0 0.0
        %525 = vmatprep.subr.mxu0 0.0
        %526 = vmatpush1.msra.mxu0 0.0
        %527 = vmatprep.subr.mxu0 0.0
        %528 = vmatpush1.msra.mxu0 0.0
        %529 = vmatprep.subr.mxu0 0.0
        %530 = vmatpush1.msra.mxu0 0.0
        %531 = vmatprep.subr.mxu0 0.0
        %532 = vmatpush1.msra.mxu0 0.0
        %533 = vmatprep.subr.mxu0 0.0
        %534 = vmatpush1.msra.mxu0 0.0
        %535 = vmatprep.subr.mxu0 0.0
        %536 = vmatpush1.msra.mxu0 0.0
        %537 = vmatprep.subr.mxu0 0.0
        %538 = vmatpush1.msra.mxu0 0.0
        %539 = vmatprep.subr.mxu0 0.0
        %540 = vmatpush1.msra.mxu0 0.0
        %541 = vmatprep.subr.mxu0 0.0
        %542 = vmatpush1.msra.mxu0 0.0
        %543 = vmatprep.subr.mxu0 0.0
        %544 = vmatpush1.msra.mxu0 0.0
        %545 = vmatprep.subr.mxu0 0.0
        %546 = vmatpush1.msra.mxu0 0.0
        %547 = vmatprep.subr.mxu0 0.0
        %548 = vmatpush1.msra.mxu0 0.0
        %549 = vmatprep.subr.mxu0 0.0
        %550 = vmatpush1.msra.mxu0 0.0
        %551 = vmatprep.subr.mxu0 0.0
        %552 = vmatpush1.msra.mxu0 0.0
        %553 = vmatprep.subr.mxu0 0.0
        %554 = vmatpush1.msra.mxu0 0.0
        %555 = vmatprep.subr.mxu0 0.0
        %556 = vmatpush1.msra.mxu0 0.0
        %557 = vmatprep.mubr.f32.mxu0 0.0
        %558 = vmatmul.mubr.f32.gmra.mrb[0].mxu0 %v302
        %v559 = vpop.f32.mrb[0].mxu0
        %v560 = vadd.f32 %v298, %v559
        %v561 = vpop.f32.mrb[0].mxu0
        %562 = vmatprep.mubr.f32.mxu0 0.0
        %563 = vmatmul.mubr.f32.gmra.mrb[0].mxu0 %v305
        %v564 = vpop.f32.mrb[0].mxu0
        %v565 = vadd.f32 %v298, %v564
        %v566 = vpop.f32.mrb[0].mxu0
        %567 = vmatprep.mubr.f32.mxu0 0.0
        %568 = vmatmul.mubr.f32.gmra.mrb[0].mxu0 %v308
        %v569 = vpop.f32.mrb[0].mxu0
        %v570 = vadd.f32 %v298, %v569
        %v571 = vpop.f32.mrb[0].mxu0
        %572 = vmatprep.mubr.f32.mxu0 0.0
        %573 = vmatmul.mubr.f32.gmra.mrb[0].mxu0 %v311
        %v574 = vpop.f32.mrb[0].mxu0
        %v575 = vadd.f32 %v298, %v574
        %v576 = vpop.f32.mrb[0].mxu0
        %577 = vmatprep.mubr.f32.mxu0 0.0
        %578 = vmatmul.mubr.f32.gmra.mrb[0].mxu0 %v314
        %v579 = vpop.f32.mrb[0].mxu0
        %v580 = vadd.f32 %v298, %v579
        %v581 = vpop.f32.mrb[0].mxu0
        %582 = vmatprep.mubr.f32.mxu0 0.0
        %583 = vmatmul.mubr.f32.gmra.mrb[0].mxu0 %v317
        %v584 = vpop.f32.mrb[0].mxu0
        %v585 = vadd.f32 %v298, %v584
        %v586 = vpop.f32.mrb[0].mxu0
        %587 = vmatprep.mubr.f32.mxu0 0.0
        %588 = vmatmul.mubr.f32.gmra.mrb[0].mxu0 %v320
        %v589 = vpop.f32.mrb[0].mxu0
        %v590 = vadd.f32 %v298, %v589
        %v591 = vpop.f32.mrb[0].mxu0
        %592 = vmatprep.mubr.f32.mxu0 0.0
        %593 = vmatmul.mubr.f32.gmra.mrb[0].mxu0 %v323
        %v594 = vpop.f32.mrb[0].mxu0
        %v595 = vadd.f32 %v298, %v594
        %v596 = vpop.f32.mrb[0].mxu0
        %597 = vmatprep.mubr.f32.mxu0 0.0
        %598 = vmatmul.mubr.f32.gmra.mrb[0].mxu0 %v326
        %v599 = vpop.f32.mrb[0].mxu0
        %v600 = vadd.f32 %v298, %v599
        %v601 = vpop.f32.mrb[0].mxu0
        %602 = vmatprep.mubr.f32.mxu0 0.0
        %603 = vmatmul.mubr.f32.gmra.mrb[0].mxu0 %v329
        %v604 = vpop.f32.mrb[0].mxu0
        %v605 = vadd.f32 %v298, %v604
        %v606 = vpop.f32.mrb[0].mxu0
        %607 = vmatprep.mubr.f32.mxu0 0.0
        %608 = vmatmul.mubr.f32.gmra.mrb[0].mxu0 %v332
        %v609 = vpop.f32.mrb[0].mxu0
        %v610 = vadd.f32 %v298, %v609
        %v611 = vpop.f32.mrb[0].mxu0
        %612 = vmatprep.mubr.f32.mxu0 0.0
        %613 = vmatmul.mubr.f32.gmra.mrb[0].mxu0 %v335
        %v614 = vpop.f32.mrb[0].mxu0
        %v615 = vadd.f32 %v298, %v614
        %v616 = vpop.f32.mrb[0].mxu0
        %617 = vmatprep.mubr.f32.mxu0 0.0
        %618 = vmatmul.mubr.f32.gmra.mrb[0].mxu0 %v338
        %v619 = vpop.f32.mrb[0].mxu0
        %v620 = vadd.f32 %v298, %v619
        %v621 = vpop.f32.mrb[0].mxu0
        %622 = vmatprep.mubr.f32.mxu0 0.0
        %623 = vmatmul.mubr.f32.gmra.mrb[0].mxu0 %v341
        %v624 = vpop.f32.mrb[0].mxu0
        %v625 = vadd.f32 %v298, %v624
        %v626 = vpop.f32.mrb[0].mxu0
        %627 = vmatprep.mubr.f32.mxu0 0.0
        %628 = vmatmul.mubr.f32.gmra.mrb[0].mxu0 %v344
        %v629 = vpop.f32.mrb[0].mxu0
        %v630 = vadd.f32 %v298, %v629
        %v631 = vpop.f32.mrb[0].mxu0
        %632 = vmatprep.mubr.f32.mxu0 0.0
        %633 = vmatmul.mubr.f32.gmra.mrb[0].mxu0 %v347
        %v634 = vpop.f32.mrb[0].mxu0
        %v635 = vadd.f32 %v298, %v634
        %v636 = vpop.f32.mrb[0].mxu0
        %637 = vmatprep.mubr.f32.mxu0 0.0
        %638 = vmatmul.mubr.f32.gmra.mrb[0].mxu0 %v350
        %v639 = vpop.f32.mrb[0].mxu0
        %v640 = vadd.f32 %v298, %v639
        %v641 = vpop.f32.mrb[0].mxu0
        %642 = vmatprep.mubr.f32.mxu0 0.0
        %643 = vmatmul.mubr.f32.gmra.mrb[0].mxu0 %v353
        %v644 = vpop.f32.mrb[0].mxu0
        %v645 = vadd.f32 %v298, %v644
        %v646 = vpop.f32.mrb[0].mxu0
        %647 = vmatprep.mubr.f32.mxu0 0.0
        %648 = vmatmul.mubr.f32.gmra.mrb[0].mxu0 %v356
        %v649 = vpop.f32.mrb[0].mxu0
        %v650 = vadd.f32 %v298, %v649
        %v651 = vpop.f32.mrb[0].mxu0
        %652 = vmatprep.mubr.f32.mxu0 0.0
        %653 = vmatmul.mubr.f32.gmra.mrb[0].mxu0 %v359
        %v654 = vpop.f32.mrb[0].mxu0
        %v655 = vadd.f32 %v298, %v654
        %v656 = vpop.f32.mrb[0].mxu0
        %657 = vmatprep.mubr.f32.mxu0 0.0
        %658 = vmatmul.mubr.f32.gmra.mrb[0].mxu0 %v362
        %v659 = vpop.f32.mrb[0].mxu0
        %v660 = vadd.f32 %v298, %v659
        %v661 = vpop.f32.mrb[0].mxu0
        %662 = vmatprep.mubr.f32.mxu0 0.0
        %663 = vmatmul.mubr.f32.gmra.mrb[0].mxu0 %v365
        %v664 = vpop.f32.mrb[0].mxu0
        %v665 = vadd.f32 %v298, %v664
        %v666 = vpop.f32.mrb[0].mxu0
        %667 = vmatprep.mubr.f32.mxu0 0.0
        %668 = vmatmul.mubr.f32.gmra.mrb[0].mxu0 %v368
        %v669 = vpop.f32.mrb[0].mxu0
        %v670 = vadd.f32 %v298, %v669
        %v671 = vpop.f32.mrb[0].mxu0
        %672 = vmatprep.mubr.f32.mxu0 0.0
        %673 = vmatmul.mubr.f32.gmra.mrb[0].mxu0 %v371
        %v674 = vpop.f32.mrb[0].mxu0
        %v675 = vadd.f32 %v298, %v674
        %v676 = vpop.f32.mrb[0].mxu0
        %677 = vmatprep.mubr.f32.mxu0 0.0
        %678 = vmatmul.mubr.f32.gmra.mrb[0].mxu0 %v374
        %v679 = vpop.f32.mrb[0].mxu0
        %v680 = vadd.f32 %v298, %v679
        %v681 = vpop.f32.mrb[0].mxu0
        %682 = vmatprep.mubr.f32.mxu0 0.0
        %683 = vmatmul.mubr.f32.gmra.mrb[0].mxu0 %v377
        %v684 = vpop.f32.mrb[0].mxu0
        %v685 = vadd.f32 %v298, %v684
        %v686 = vpop.f32.mrb[0].mxu0
        %687 = vmatprep.mubr.f32.mxu0 0.0
        %688 = vmatmul.mubr.f32.gmra.mrb[0].mxu0 %v380
        %v689 = vpop.f32.mrb[0].mxu0
        %v690 = vadd.f32 %v298, %v689
        %v691 = vpop.f32.mrb[0].mxu0
        %692 = vmatprep.mubr.f32.mxu0 0.0
        %693 = vmatmul.mubr.f32.gmra.mrb[0].mxu0 %v383
        %v694 = vpop.f32.mrb[0].mxu0
        %v695 = vadd.f32 %v298, %v694
        %v696 = vpop.f32.mrb[0].mxu0
        %697 = vmatprep.mubr.f32.mxu0 0.0
        %698 = vmatmul.mubr.f32.gmra.mrb[0].mxu0 %v386
        %v699 = vpop.f32.mrb[0].mxu0
        %v700 = vadd.f32 %v298, %v699
        %v701 = vpop.f32.mrb[0].mxu0
        %702 = vmatprep.mubr.f32.mxu0 0.0
        %703 = vmatmul.mubr.f32.gmra.mrb[0].mxu0 %v389
        %v704 = vpop.f32.mrb[0].mxu0
        %v705 = vadd.f32 %v298, %v704
        %v706 = vpop.f32.mrb[0].mxu0
        %707 = vmatprep.mubr.f32.mxu0 0.0
        %708 = vmatmul.mubr.f32.gmra.mrb[0].mxu0 %v392
        %v709 = vpop.f32.mrb[0].mxu0
        %v710 = vadd.f32 %v298, %v709
        %v711 = vpop.f32.mrb[0].mxu0
        %712 = vmatprep.mubr.f32.mxu0 0.0
        %713 = vmatmul.mubr.f32.gmra.mrb[0].mxu0 %v395
        %v714 = vpop.f32.mrb[0].mxu0
        %v715 = vadd.f32 %v298, %v714
        %v716 = vpop.f32.mrb[0].mxu0
        %717 = vmatprep.mubr.f32.mxu0 0.0
        %718 = vmatmul.mubr.f32.gmra.mrb[0].mxu0 %v398
        %v719 = vpop.f32.mrb[0].mxu0
        %v720 = vadd.f32 %v298, %v719
        %v721 = vpop.f32.mrb[0].mxu0
        %722 = vmatprep.mubr.f32.mxu0 0.0
        %723 = vmatmul.mubr.f32.gmra.mrb[0].mxu0 %v401
        %v724 = vpop.f32.mrb[0].mxu0
        %v725 = vadd.f32 %v298, %v724
        %v726 = vpop.f32.mrb[0].mxu0
        %727 = vmatprep.mubr.f32.mxu0 0.0
        %728 = vmatmul.mubr.f32.gmra.mrb[0].mxu0 %v404
        %v729 = vpop.f32.mrb[0].mxu0
        %v730 = vadd.f32 %v298, %v729
        %v731 = vpop.f32.mrb[0].mxu0
        %732 = vmatprep.mubr.f32.mxu0 0.0
        %733 = vmatmul.mubr.f32.gmra.mrb[0].mxu0 %v407
        %v734 = vpop.f32.mrb[0].mxu0
        %v735 = vadd.f32 %v298, %v734
        %v736 = vpop.f32.mrb[0].mxu0
        %737 = vmatprep.mubr.f32.mxu0 0.0
        %738 = vmatmul.mubr.f32.gmra.mrb[0].mxu0 %v410
        %v739 = vpop.f32.mrb[0].mxu0
        %v740 = vadd.f32 %v298, %v739
        %v741 = vpop.f32.mrb[0].mxu0
        %742 = vmatprep.mubr.f32.mxu0 0.0
        %743 = vmatmul.mubr.f32.gmra.mrb[0].mxu0 %v413
        %v744 = vpop.f32.mrb[0].mxu0
        %v745 = vadd.f32 %v298, %v744
        %v746 = vpop.f32.mrb[0].mxu0
        %747 = vmatprep.mubr.f32.mxu0 0.0
        %748 = vmatmul.mubr.f32.gmra.mrb[0].mxu0 %v416
        %v749 = vpop.f32.mrb[0].mxu0
        %v750 = vadd.f32 %v298, %v749
        %v751 = vpop.f32.mrb[0].mxu0
        %752 = vmatprep.mubr.f32.mxu0 0.0
        %753 = vmatmul.mubr.f32.gmra.mrb[0].mxu0 %v419
        %v754 = vpop.f32.mrb[0].mxu0
        %v755 = vadd.f32 %v298, %v754
        %v756 = vpop.f32.mrb[0].mxu0
        %757 = vmatprep.mubr.f32.mxu0 0.0
        %758 = vmatmul.mubr.f32.gmra.mrb[0].mxu0 %v422
        %v759 = vpop.f32.mrb[0].mxu0
        %v760 = vadd.f32 %v298, %v759
        %v761 = vpop.f32.mrb[0].mxu0
        %762 = vmatprep.mubr.f32.mxu0 0.0
        %763 = vmatmul.mubr.f32.gmra.mrb[0].mxu0 %v425
        %v764 = vpop.f32.mrb[0].mxu0
        %v765 = vadd.f32 %v298, %v764
        %v766 = vpop.f32.mrb[0].mxu0
        %767 = vmatprep.mubr.f32.mxu0 0.0
        %768 = vmatmul.mubr.f32.gmra.mrb[0].mxu0 %v428
        %v769 = vpop.f32.mrb[0].mxu0
        %v770 = vadd.f32 %v298, %v769
        %v771 = vpop.f32.mrb[0].mxu0
        %772 = vmatprep.mubr.f32.mxu0 0.0
        %773 = vmatmul.mubr.f32.gmra.mrb[0].mxu0 %v431
        %v774 = vpop.f32.mrb[0].mxu0
        %v775 = vadd.f32 %v298, %v774
        %v776 = vpop.f32.mrb[0].mxu0
        %777 = vmatprep.mubr.f32.mxu0 0.0
        %778 = vmatmul.mubr.f32.gmra.mrb[0].mxu0 %v434
        %v779 = vpop.f32.mrb[0].mxu0
        %v780 = vadd.f32 %v298, %v779
        %v781 = vpop.f32.mrb[0].mxu0
        %782 = vmatprep.mubr.f32.mxu0 0.0
        %783 = vmatmul.mubr.f32.gmra.mrb[0].mxu0 %v437
        %v784 = vpop.f32.mrb[0].mxu0
        %v785 = vadd.f32 %v298, %v784
        %v786 = vpop.f32.mrb[0].mxu0
        %787 = vmatprep.mubr.f32.mxu0 0.0
        %788 = vmatmul.mubr.f32.gmra.mrb[0].mxu0 %v440
        %v789 = vpop.f32.mrb[0].mxu0
        %v790 = vadd.f32 %v298, %v789
        %v791 = vpop.f32.mrb[0].mxu0
        %792 = vmatprep.mubr.f32.mxu0 0.0
        %793 = vmatmul.mubr.f32.gmra.mrb[0].mxu0 %v443
        %v794 = vpop.f32.mrb[0].mxu0
        %v795 = vadd.f32 %v298, %v794
        %v796 = vpop.f32.mrb[0].mxu0
        %797 = vmatprep.mubr.f32.mxu0 0.0
        %798 = vmatmul.mubr.f32.gmra.mrb[0].mxu0 %v446
        %v799 = vpop.f32.mrb[0].mxu0
        %v800 = vadd.f32 %v298, %v799
        %v801 = vpop.f32.mrb[0].mxu0
        %802 = vmatprep.mubr.f32.mxu0 0.0
        %803 = vmatmul.mubr.f32.gmra.mrb[0].mxu0 %v449
        %v804 = vpop.f32.mrb[0].mxu0
        %v805 = vadd.f32 %v298, %v804
        %v806 = vpop.f32.mrb[0].mxu0
        %807 = vmatprep.mubr.f32.mxu0 0.0
        %808 = vmatmul.mubr.f32.gmra.mrb[0].mxu0 %v452
        %v809 = vpop.f32.mrb[0].mxu0
        %v810 = vadd.f32 %v298, %v809
        %v811 = vpop.f32.mrb[0].mxu0
        %812 = vmatprep.mubr.f32.mxu0 0.0
        %813 = vmatmul.mubr.f32.gmra.mrb[0].mxu0 %v455
        %v814 = vpop.f32.mrb[0].mxu0
        %v815 = vadd.f32 %v298, %v814
        %v816 = vpop.f32.mrb[0].mxu0
        %817 = vmatprep.mubr.f32.mxu0 0.0
        %818 = vmatmul.mubr.f32.gmra.mrb[0].mxu0 %v458
        %v819 = vpop.f32.mrb[0].mxu0
        %v820 = vadd.f32 %v298, %v819
        %v821 = vpop.f32.mrb[0].mxu0
        %822 = vmatprep.mubr.f32.mxu0 0.0
        %823 = vmatmul.mubr.f32.gmra.mrb[0].mxu0 %v461
        %v824 = vpop.f32.mrb[0].mxu0
        %v825 = vadd.f32 %v298, %v824
        %v826 = vpop.f32.mrb[0].mxu0
        %827 = vmatprep.mubr.f32.mxu0 0.0
        %828 = vmatmul.mubr.f32.gmra.mrb[0].mxu0 %v464
        %v829 = vpop.f32.mrb[0].mxu0
        %v830 = vadd.f32 %v298, %v829
        %v831 = vpop.f32.mrb[0].mxu0
        %832 = vmatprep.mubr.f32.mxu0 0.0
        %833 = vmatmul.mubr.f32.gmra.mrb[0].mxu0 %v467
        %v834 = vpop.f32.mrb[0].mxu0
        %v835 = vadd.f32 %v298, %v834
        %v836 = vpop.f32.mrb[0].mxu0
        %837 = vmatprep.mubr.f32.mxu0 0.0
        %838 = vmatmul.mubr.f32.gmra.mrb[0].mxu0 %v470
        %v839 = vpop.f32.mrb[0].mxu0
        %v840 = vadd.f32 %v298, %v839
        %v841 = vpop.f32.mrb[0].mxu0
        %842 = vmatprep.mubr.f32.mxu0 0.0
        %843 = vmatmul.mubr.f32.gmra.mrb[0].mxu0 %v473
        %v844 = vpop.f32.mrb[0].mxu0
        %v845 = vadd.f32 %v298, %v844
        %v846 = vpop.f32.mrb[0].mxu0
        %847 = vmatprep.mubr.f32.mxu0 0.0
        %848 = vmatmul.mubr.f32.gmra.mrb[0].mxu0 %v476
        %v849 = vpop.f32.mrb[0].mxu0
        %v850 = vadd.f32 %v298, %v849
        %v851 = vpop.f32.mrb[0].mxu0
        %852 = vmatprep.mubr.f32.mxu0 0.0
        %853 = vmatmul.mubr.f32.gmra.mrb[0].mxu0 %v479
        %v854 = vpop.f32.mrb[0].mxu0
        %v855 = vadd.f32 %v298, %v854
        %v856 = vpop.f32.mrb[0].mxu0
        %857 = vmatprep.mubr.f32.mxu0 0.0
        %858 = vmatmul.mubr.f32.gmra.mrb[0].mxu0 %v482
        %v859 = vpop.f32.mrb[0].mxu0
        %v860 = vadd.f32 %v298, %v859
        %v861 = vpop.f32.mrb[0].mxu0
        %862 = vmatprep.mubr.f32.mxu0 0.0
        %863 = vmatmul.mubr.f32.gmra.mrb[0].mxu0 %v485
        %v864 = vpop.f32.mrb[0].mxu0
        %v865 = vadd.f32 %v298, %v864
        %v866 = vpop.f32.mrb[0].mxu0
        %867 = vmatprep.mubr.f32.mxu0 0.0
        %868 = vmatmul.mubr.f32.gmra.mrb[0].mxu0 %v488
        %v869 = vpop.f32.mrb[0].mxu0
        %v870 = vadd.f32 %v298, %v869
        %v871 = vpop.f32.mrb[0].mxu0
        %872 = vmatprep.mubr.f32.mxu0 0.0
        %873 = vmatmul.mubr.f32.gmra.mrb[0].mxu0 %v491
        %v874 = vpop.f32.mrb[0].mxu0
        %v875 = vadd.f32 %v298, %v874
        %v876 = vpop.f32.mrb[0].mxu0
        %877 = vdwg.mxu0
        %878 = vst [vmem:[%s222] sm:$0xff] %v560
        %879 = vst [vmem:[%s222 + $0x8] sm:$0xff] %v565
        %880 = vst [vmem:[%s222 + $0x10] sm:$0xff] %v570
        %881 = vst [vmem:[%s222 + $0x18] sm:$0xff] %v575
        %882 = vst [vmem:[%s222 + $0x20] sm:$0xff] %v580
        %883 = vst [vmem:[%s222 + $0x28] sm:$0xff] %v585
        %884 = vst [vmem:[%s222 + $0x30] sm:$0xff] %v590
        %885 = vst [vmem:[%s222 + $0x38] sm:$0xff] %v595
        %886 = vst [vmem:[%s222 + $0x40] sm:$0xff] %v600
        %887 = vst [vmem:[%s222 + $0x48] sm:$0xff] %v605
        %888 = vst [vmem:[%s222 + $0x50] sm:$0xff] %v610
        %889 = vst [vmem:[%s222 + $0x58] sm:$0xff] %v615
        %890 = vst [vmem:[%s222 + $0x60] sm:$0xff] %v620
        %891 = vst [vmem:[%s222 + $0x68] sm:$0xff] %v625
        %892 = vst [vmem:[%s222 + $0x70] sm:$0xff] %v630
        %893 = vst [vmem:[%s222 + $0x78] sm:$0xff] %v635
        %894 = vst [vmem:[%s222 + $0x80] sm:$0xff] %v640
        %895 = vst [vmem:[%s222 + $0x88] sm:$0xff] %v645
        %896 = vst [vmem:[%s222 + $0x90] sm:$0xff] %v650
        %897 = vst [vmem:[%s222 + $0x98] sm:$0xff] %v655
        %898 = vst [vmem:[%s222 + $0xa0] sm:$0xff] %v660
        %899 = vst [vmem:[%s222 + $0xa8] sm:$0xff] %v665
        %900 = vst [vmem:[%s222 + $0xb0] sm:$0xff] %v670
        %901 = vst [vmem:[%s222 + $0xb8] sm:$0xff] %v675
        %902 = vst [vmem:[%s222 + $0xc0] sm:$0xff] %v680
        %903 = vst [vmem:[%s222 + $0xc8] sm:$0xff] %v685
        %904 = vst [vmem:[%s222 + $0xd0] sm:$0xff] %v690
        %905 = vst [vmem:[%s222 + $0xd8] sm:$0xff] %v695
        %906 = vst [vmem:[%s222 + $0xe0] sm:$0xff] %v700
        %907 = vst [vmem:[%s222 + $0xe8] sm:$0xff] %v705
        %908 = vst [vmem:[%s222 + $0xf0] sm:$0xff] %v710
        %909 = vst [vmem:[%s222 + $0xf8] sm:$0xff] %v715
        %910 = vst [vmem:[%s222 + $0x100] sm:$0xff] %v720
        %911 = vst [vmem:[%s222 + $0x108] sm:$0xff] %v725
        %912 = vst [vmem:[%s222 + $0x110] sm:$0xff] %v730
        %913 = vst [vmem:[%s222 + $0x118] sm:$0xff] %v735
        %914 = vst [vmem:[%s222 + $0x120] sm:$0xff] %v740
        %915 = vst [vmem:[%s222 + $0x128] sm:$0xff] %v745
        %916 = vst [vmem:[%s222 + $0x130] sm:$0xff] %v750
        %917 = vst [vmem:[%s222 + $0x138] sm:$0xff] %v755
        %918 = vst [vmem:[%s222 + $0x140] sm:$0xff] %v760
        %919 = vst [vmem:[%s222 + $0x148] sm:$0xff] %v765
        %920 = vst [vmem:[%s222 + $0x150] sm:$0xff] %v770
        %921 = vst [vmem:[%s222 + $0x158] sm:$0xff] %v775
        %922 = vst [vmem:[%s222 + $0x160] sm:$0xff] %v780
        %923 = vst [vmem:[%s222 + $0x168] sm:$0xff] %v785
        %924 = vst [vmem:[%s222 + $0x170] sm:$0xff] %v790
        %925 = vst [vmem:[%s222 + $0x178] sm:$0xff] %v795
        %926 = vst [vmem:[%s222 + $0x180] sm:$0xff] %v800
        %927 = vst [vmem:[%s222 + $0x188] sm:$0xff] %v805
        %928 = vst [vmem:[%s222 + $0x190] sm:$0xff] %v810
        %929 = vst [vmem:[%s222 + $0x198] sm:$0xff] %v815
        %930 = vst [vmem:[%s222 + $0x1a0] sm:$0xff] %v820
        %931 = vst [vmem:[%s222 + $0x1a8] sm:$0xff] %v825
        %932 = vst [vmem:[%s222 + $0x1b0] sm:$0xff] %v830
        %933 = vst [vmem:[%s222 + $0x1b8] sm:$0xff] %v835
        %934 = vst [vmem:[%s222 + $0x1c0] sm:$0xff] %v840
        %935 = vst [vmem:[%s222 + $0x1c8] sm:$0xff] %v845
        %936 = vst [vmem:[%s222 + $0x1d0] sm:$0xff] %v850
        %937 = vst [vmem:[%s222 + $0x1d8] sm:$0xff] %v855
        %938 = vst [vmem:[%s222 + $0x1e0] sm:$0xff] %v860
        %939 = vst [vmem:[%s222 + $0x1e8] sm:$0xff] %v865
        %940 = vst [vmem:[%s222 + $0x1f0] sm:$0xff] %v870
        %941 = vst [vmem:[%s222 + $0x1f8] sm:$0xff] %v875
        %s942 = sand.u32 %s113, 1
        %s943 = scalar_lea.sflag [#allocation4], %s942
        %s944 = sand.u32 %s113, 1
        %s945 = smul.addr %s944, 512
        %s946 = scalar_lea.vmem [#allocation7], %s945
        // Predicated region
        $region41: #{tpu_custom_call.1} parent=31 // pred_check
          %p947 = pneg %p123
        $region42: #{tpu_custom_call.1} parent=31 // pred_check_branch
          %949 = sbr.rel (%p947) target = $region44
        $region43: #{tpu_custom_call.1} parent=31 // pred_region
          %s950 = smul.u32 16, %s26
          %s952 = ssub.s32 8192, 8192
          %953 = vsyncadd %s943, %s952
          %s954 = smul.addr %s950, 4
          %s955 = smul.addr %s25, 128
          %s956 = sadd.s32 %s954, %s955
          %s957 = smul.addr %s956, 128
          %s958 = scalar_lea.hbm %s3, %s957
          %s959 = sshll.u32 %s946, 4
          %s960 = int_to_ptr.vmem [resolvable:$true] %s959
          %965 = dma.vmem_to_hbm [thread:$0]  %s960, 8192, %s958, %s943, 128, 128, 8
        $region44: #{tpu_custom_call.1} parent=31 // pred_fallthru
          _
      $region32: #{tpu_custom_call.1} parent=5 // pred_fallthru
        _
      %p966 = scmp.le.s32.totalorder 2, %s16
      // Predicated region
      $region45: #{tpu_custom_call.1} parent=5 // pred_check
        %p967 = pneg %p966
      $region46: #{tpu_custom_call.1} parent=5 // pred_check_branch
        %969 = sbr.rel (%p967) target = $region48
      $region47: #{tpu_custom_call.1} parent=5 // pred_region
        %s970 = ssub.s32 %s16, 2
        // Predicated region
        $region49: #{tpu_custom_call.1} parent=47 // pred_check
          %p971 = pneg %p129
        $region50: #{tpu_custom_call.1} parent=47 // pred_check_branch
          %973 = sbr.rel (%p971) target = $region52
        $region51: #{tpu_custom_call.1} parent=47 // pred_region
          %s974 = sand.u32 %s114, 1
          %s975 = scalar_lea.sflag [#allocation4], %s974
          %s976 = sand.u32 %s114, 1
          %s977 = smul.addr %s976, 512
          %s978 = scalar_lea.vmem [#allocation7], %s977
          %979 = dma.done %s975, 8192
        $region52: #{tpu_custom_call.1} parent=47 // pred_fallthru
          _
      $region48: #{tpu_custom_call.1} parent=5 // pred_fallthru
        _
    $region6: #{tpu_custom_call.1} parent=1 // loop_footer
      %s20 = sadd.s32 1, %s16
    $region7: #{tpu_custom_call.1} parent=1 // loop_footer_branch
      %15 = sbr.rel target = $region3
    $region8: #{tpu_custom_call.1} parent=1 // loop_exit
      _
    %980 = vsyncpa [#allocation3], 1
    %s981 = scalar_lea.sflag [#allocation3], 1
    %982 = vsyncpa %s981, 1
    %983 = vsyncpa [#allocation6], 1
    %984 = vsyncpa [#allocation4], 1
    %s985 = scalar_lea.sflag [#allocation4], 1
    %986 = vsyncpa %s985, 1

</llo_original>
